<compile_context>
chip_gen: v6e
topology: v6e:2x2x1
jax: 0.10.0
libtpu: 0.0.40
codegen_flags: <defaults>
</compile_context>

<pallas_src>
import functools

import jax
import jax.numpy as jnp
from jax.experimental import pallas as pl
from jax.experimental.pallas import tpu as pltpu

_BIAS_PAD = 128  # lane-pad every bias row so the slab is one (6, 128) f32 tile


def _round_up(n, m):
    return ((n + m - 1) // m) * m


def mlp_kernel(x_ref,
               w1_ref, w2_ref, w3_ref, w4_ref, w5_ref, w6_ref,
               b_ref,
               o_ref,
               *, widths):
    """One batch tile of the fused MLP forward pass.

    widths: static tuple of per-layer output widths (slices the packed bias
    slab). Dropout layers are identity at inference.
    """
    # Feed the input tile straight to the MXU in bf16 (no f32 round-trip).
    h = x_ref[...].astype(jnp.bfloat16)

    def dense(h_bf16, w_ref, layer, relu):
        # bf16 MXU matmul, f32 accumulation; f32 bias add (VPU-safe on v5e).
        y = jnp.dot(h_bf16, w_ref[...], preferred_element_type=jnp.float32)
        y = y + b_ref[layer:layer + 1, :widths[layer]]      # bcast over rows
        if relu:
            # Produce the hidden activation directly in bf16: numerically the
            # same as casting right before the next matmul, but halves the
            # VMEM bytes stored/reloaded per hidden layer.
            return jnp.maximum(y, 0.0).astype(jnp.bfloat16)
        return y                                             # final layer: f32

    h = dense(h, w1_ref, 0, True)
    h = dense(h, w2_ref, 1, True)
    h = dense(h, w3_ref, 2, True)
    h = dense(h, w4_ref, 3, True)
    h = dense(h, w5_ref, 4, True)
    y = dense(h, w6_ref, 5, False)           # dense6: no ReLU, keep f32
    o_ref[...] = y.astype(o_ref.dtype)


def _select_tile(B, tb_max):
    """Pick (tb, b_pad, n_tiles) minimizing padding and keeping grid >= 2."""
    B = max(int(B), 1)
    # Tile never larger than the (sublane-rounded) batch, always a multiple of 8.
    tb_cap = max(8, _round_up(min(tb_max, B), 8))
    n_tiles = pl.cdiv(B, tb_cap)
    # Keep grid >= 2 when the batch is big enough, so the "parallel" batch axis
    # can actually shard across v7x's two TensorCores (no-op on v5e/v6e).
    if n_tiles < 2 and B > 8:
        n_tiles = 2
    # Re-derive tb from the tile count -> padding bounded by ~8*n_tiles rows.
    tb = max(8, _round_up(pl.cdiv(B, n_tiles), 8))
    n_tiles = pl.cdiv(B, tb)
    b_pad = n_tiles * tb
    return tb, b_pad, n_tiles


def mlp_forward(x, params, seq_len_future, num_output_parameters, *, tb=2048):
    """x: [B, F] float32.  params: list of 6 (W[in, out], b[out]) f32 pairs.

    tb: max batch-tile size (sweep 2048-4096 for large B; the VMEM limit below
    is derived from it and stays within v7x's 64 MiB).
    """
    B, F = x.shape
    out_dim = params[-1][0].shape[1]
    widths = tuple(w.shape[1] for w, _ in params)
    assert all(w <= _BIAS_PAD for w in widths), (
        f"layer widths {widths} must all be <= bias-slab pad {_BIAS_PAD}")

    tb, b_pad, n_tiles = _select_tile(B, tb)
    if b_pad != B:
        x = jnp.pad(x, ((0, b_pad - B), (0, 0)))

    # Weights cast once to bf16 (MXU-native); biases packed into one f32 slab.
    ws = [w.astype(jnp.bfloat16) for w, _ in params]
    bias_slab = jnp.zeros((len(params), _BIAS_PAD), jnp.float32)
    for i, (_, b) in enumerate(params):
        bias_slab = bias_slab.at[i, :b.shape[-1]].set(b.reshape(-1))

    # ---- VMEM budget (per grid step) ---------------------------------------
    weight_bytes = sum(int(w.size) for w in ws) * 2 + bias_slab.size * 4
    io_bytes = 2 * tb * 4 * (F + out_dim)                 # x/out, double-buffered
    act_bytes = tb * 4 * sum(widths)                      # bf16 acts + f32 transients
    vmem_est = 2 * (weight_bytes + io_bytes + act_bytes)  # 2x headroom for Mosaic
    vmem_limit = int(min(max(vmem_est, 32 << 20), 64 << 20))  # v7x-safe cap

    # ---- Advisory cost estimate for XLA's scheduler ------------------------
    dims = (F,) + widths
    flops = 2 * b_pad * sum(dims[i] * dims[i + 1] for i in range(len(widths)))
    bytes_accessed = (b_pad * F * 4 + weight_bytes + b_pad * out_dim * 4)
    cost = pl.CostEstimate(flops=flops, transcendentals=0,
                           bytes_accessed=bytes_accessed)

    grid = (n_tiles,)
    in_specs = [pl.BlockSpec((tb, F), lambda i: (i, 0))]
    # Constant index maps -> weights/bias stay resident in VMEM across steps.
    in_specs += [pl.BlockSpec(w.shape, lambda i: (0, 0)) for w in ws]
    in_specs += [pl.BlockSpec(bias_slab.shape, lambda i: (0, 0))]

    out = pl.pallas_call(
        functools.partial(mlp_kernel, widths=widths),
        out_shape=jax.ShapeDtypeStruct((b_pad, out_dim), jnp.float32),
        grid=grid,
        in_specs=in_specs,
        # out_dim=8 -> masked partial store, consciously accepted (32 B/row).
        out_specs=pl.BlockSpec((tb, out_dim), lambda i: (i, 0)),
        compiler_params=pltpu.CompilerParams(
            dimension_semantics=("parallel",),
            vmem_limit_bytes=vmem_limit),
        cost_estimate=cost,
    )(x, *ws, bias_slab)

    out = out[:B]
    return out.reshape(-1, seq_len_future, num_output_parameters)


def init_params(key, in_dim, out_dim_final):
    """nn.Linear-style init; W stored as [in, out] (transposed vs torch)."""
    dims = [in_dim, 128, 128, 64, 64, 64, out_dim_final]
    params = []
    for i in range(6):
        key, kw, kb = jax.random.split(key, 3)
        fan_in, fan_out = dims[i], dims[i + 1]
        bound = 1.0 / jnp.sqrt(fan_in)
        w = jax.random.uniform(kw, (fan_in, fan_out), jnp.float32, -bound, bound)
        b = jax.random.uniform(kb, (fan_out,), jnp.float32, -bound, bound)
        params.append((w, b))
    return params


if __name__ == "__main__":
    # Small shapes consistent with the module's forward contract
    # (forward assumes an already-flattened [B, seq_len_past*num_input] input).
    seq_len_past = 8
    num_input_parameters = 4
    seq_len_future = 4
    num_output_parameters = 2
    batch = 2

    in_dim = seq_len_past * num_input_parameters          # 32
    out_dim = seq_len_future * num_output_parameters      # 8

    key = jax.random.PRNGKey(0)
    key, kx = jax.random.split(key)
    x = jax.random.normal(kx, (batch, in_dim), jnp.float32)

    params = init_params(key, in_dim, out_dim)

    y = mlp_forward(x, params, seq_len_future, num_output_parameters)
    y = jax.block_until_ready(y)

    assert y.shape == (batch, seq_len_future, num_output_parameters), y.shape

    # Pure-JAX reference of the same math (bf16 matmuls, f32 accumulation).
    # NOTE: this (and the kernel) round activations to bf16 before every matmul,
    # so results differ from a pure-f32 torch MLP at the ~1e-3 level by design.
    def ref(x, params):
        h = x
        for i, (w, b) in enumerate(params):
            h = jnp.dot(h.astype(jnp.bfloat16), w.astype(jnp.bfloat16),
                        preferred_element_type=jnp.float32) + b.reshape(1, -1)
            if i < 5:
                h = jnp.maximum(h, 0.0)
        return h.reshape(-1, seq_len_future, num_output_parameters)

    y_ref = ref(x, params)
    assert jnp.allclose(y, y_ref, atol=2e-3, rtol=2e-3), float(
        jnp.max(jnp.abs(y - y_ref)))

    print("KERNEL_OK")
</pallas_src>

<mosaic_0001>
module attributes {stable_mosaic.version = 11 : i64} {
  func.func @mlp_kernel(%arg0: i32, %arg1: memref<8x32xf32, #tpu.memory_space<vmem>>, %arg2: memref<32x128xbf16, #tpu.memory_space<vmem>>, %arg3: memref<128x128xbf16, #tpu.memory_space<vmem>>, %arg4: memref<128x64xbf16, #tpu.memory_space<vmem>>, %arg5: memref<64x64xbf16, #tpu.memory_space<vmem>>, %arg6: memref<64x64xbf16, #tpu.memory_space<vmem>>, %arg7: memref<64x8xbf16, #tpu.memory_space<vmem>>, %arg8: memref<6x128xf32, #tpu.memory_space<vmem>>, %arg9: memref<8x8xf32, #tpu.memory_space<vmem>>) attributes {dimension_semantics = [#tpu.dimension_semantics<parallel>], iteration_bounds = array<i64: 1>, scalar_prefetch = 0 : i64, scratch_operands = 0 : i64, tpu.core_type = #tpu.core_type<tc>, window_params = [{transform_indices = @transform_0, window_bounds = array<i64: 8, 32>}, {pipeline_mode = #tpu.pipeline_mode<synchronous>, transform_indices = @transform_1, window_bounds = array<i64: 32, 128>}, {pipeline_mode = #tpu.pipeline_mode<synchronous>, transform_indices = @transform_2, window_bounds = array<i64: 128, 128>}, {pipeline_mode = #tpu.pipeline_mode<synchronous>, transform_indices = @transform_3, window_bounds = array<i64: 128, 64>}, {pipeline_mode = #tpu.pipeline_mode<synchronous>, transform_indices = @transform_4, window_bounds = array<i64: 64, 64>}, {pipeline_mode = #tpu.pipeline_mode<synchronous>, transform_indices = @transform_5, window_bounds = array<i64: 64, 64>}, {pipeline_mode = #tpu.pipeline_mode<synchronous>, transform_indices = @transform_6, window_bounds = array<i64: 64, 8>}, {pipeline_mode = #tpu.pipeline_mode<synchronous>, transform_indices = @transform_7, window_bounds = array<i64: 6, 128>}, {transform_indices = @transform_8, window_bounds = array<i64: 8, 8>}]} {
    %c0 = arith.constant 0 : index
    %c0_0 = arith.constant 0 : index
    %0 = vector.load %arg1[%c0, %c0_0] : memref<8x32xf32, #tpu.memory_space<vmem>>, vector<8x32xf32>
    %1 = arith.truncf %0 : vector<8x32xf32> to vector<8x32xbf16>
    %c0_1 = arith.constant 0 : index
    %c0_2 = arith.constant 0 : index
    %2 = vector.load %arg2[%c0_1, %c0_2] : memref<32x128xbf16, #tpu.memory_space<vmem>>, vector<32x128xbf16>
    %cst = arith.constant dense<0.000000e+00> : vector<8x128xf32>
    %3 = tpu.matmul %1, %2, %cst {dimension_numbers = #tpu.dot_dimension_numbers<[1], [0], [0], [1], [0, 0, 1, 1], [], []>} : vector<8x32xbf16>, vector<32x128xbf16>, vector<8x128xf32> -> vector<8x128xf32>
    %c0_3 = arith.constant 0 : index
    %c0_4 = arith.constant 0 : index
    %4 = vector.load %arg8[%c0_3, %c0_4] : memref<6x128xf32, #tpu.memory_space<vmem>>, vector<1x128xf32>
    %5 = vector.broadcast %4 : vector<1x128xf32> to vector<8x128xf32>
    %6 = arith.addf %3, %5 : vector<8x128xf32>
    %cst_5 = arith.constant 0.000000e+00 : f32
    %7 = vector.broadcast %cst_5 : f32 to vector<8x128xf32>
    %8 = arith.maximumf %6, %7 : vector<8x128xf32>
    %9 = arith.truncf %8 : vector<8x128xf32> to vector<8x128xbf16>
    %c0_6 = arith.constant 0 : index
    %c0_7 = arith.constant 0 : index
    %10 = vector.load %arg3[%c0_6, %c0_7] : memref<128x128xbf16, #tpu.memory_space<vmem>>, vector<128x128xbf16>
    %cst_8 = arith.constant dense<0.000000e+00> : vector<8x128xf32>
    %11 = tpu.matmul %9, %10, %cst_8 {dimension_numbers = #tpu.dot_dimension_numbers<[1], [0], [0], [1], [0, 0, 1, 1], [], []>} : vector<8x128xbf16>, vector<128x128xbf16>, vector<8x128xf32> -> vector<8x128xf32>
    %c1 = arith.constant 1 : index
    %c0_9 = arith.constant 0 : index
    %12 = vector.load %arg8[%c1, %c0_9] : memref<6x128xf32, #tpu.memory_space<vmem>>, vector<1x128xf32>
    %13 = vector.broadcast %12 : vector<1x128xf32> to vector<8x128xf32>
    %14 = arith.addf %11, %13 : vector<8x128xf32>
    %cst_10 = arith.constant 0.000000e+00 : f32
    %15 = vector.broadcast %cst_10 : f32 to vector<8x128xf32>
    %16 = arith.maximumf %14, %15 : vector<8x128xf32>
    %17 = arith.truncf %16 : vector<8x128xf32> to vector<8x128xbf16>
    %c0_11 = arith.constant 0 : index
    %c0_12 = arith.constant 0 : index
    %18 = vector.load %arg4[%c0_11, %c0_12] : memref<128x64xbf16, #tpu.memory_space<vmem>>, vector<128x64xbf16>
    %cst_13 = arith.constant dense<0.000000e+00> : vector<8x64xf32>
    %19 = tpu.matmul %17, %18, %cst_13 {dimension_numbers = #tpu.dot_dimension_numbers<[1], [0], [0], [1], [0, 0, 1, 1], [], []>} : vector<8x128xbf16>, vector<128x64xbf16>, vector<8x64xf32> -> vector<8x64xf32>
    %c2 = arith.constant 2 : index
    %c0_14 = arith.constant 0 : index
    %20 = vector.load %arg8[%c2, %c0_14] : memref<6x128xf32, #tpu.memory_space<vmem>>, vector<1x64xf32>
    %21 = vector.broadcast %20 : vector<1x64xf32> to vector<8x64xf32>
    %22 = arith.addf %19, %21 : vector<8x64xf32>
    %cst_15 = arith.constant 0.000000e+00 : f32
    %23 = vector.broadcast %cst_15 : f32 to vector<8x64xf32>
    %24 = arith.maximumf %22, %23 : vector<8x64xf32>
    %25 = arith.truncf %24 : vector<8x64xf32> to vector<8x64xbf16>
    %c0_16 = arith.constant 0 : index
    %c0_17 = arith.constant 0 : index
    %26 = vector.load %arg5[%c0_16, %c0_17] : memref<64x64xbf16, #tpu.memory_space<vmem>>, vector<64x64xbf16>
    %cst_18 = arith.constant dense<0.000000e+00> : vector<8x64xf32>
    %27 = tpu.matmul %25, %26, %cst_18 {dimension_numbers = #tpu.dot_dimension_numbers<[1], [0], [0], [1], [0, 0, 1, 1], [], []>} : vector<8x64xbf16>, vector<64x64xbf16>, vector<8x64xf32> -> vector<8x64xf32>
    %c3 = arith.constant 3 : index
    %c0_19 = arith.constant 0 : index
    %28 = vector.load %arg8[%c3, %c0_19] : memref<6x128xf32, #tpu.memory_space<vmem>>, vector<1x64xf32>
    %29 = vector.broadcast %28 : vector<1x64xf32> to vector<8x64xf32>
    %30 = arith.addf %27, %29 : vector<8x64xf32>
    %cst_20 = arith.constant 0.000000e+00 : f32
    %31 = vector.broadcast %cst_20 : f32 to vector<8x64xf32>
    %32 = arith.maximumf %30, %31 : vector<8x64xf32>
    %33 = arith.truncf %32 : vector<8x64xf32> to vector<8x64xbf16>
    %c0_21 = arith.constant 0 : index
    %c0_22 = arith.constant 0 : index
    %34 = vector.load %arg6[%c0_21, %c0_22] : memref<64x64xbf16, #tpu.memory_space<vmem>>, vector<64x64xbf16>
    %cst_23 = arith.constant dense<0.000000e+00> : vector<8x64xf32>
    %35 = tpu.matmul %33, %34, %cst_23 {dimension_numbers = #tpu.dot_dimension_numbers<[1], [0], [0], [1], [0, 0, 1, 1], [], []>} : vector<8x64xbf16>, vector<64x64xbf16>, vector<8x64xf32> -> vector<8x64xf32>
    %c4 = arith.constant 4 : index
    %c0_24 = arith.constant 0 : index
    %36 = vector.load %arg8[%c4, %c0_24] : memref<6x128xf32, #tpu.memory_space<vmem>>, vector<1x64xf32>
    %37 = vector.broadcast %36 : vector<1x64xf32> to vector<8x64xf32>
    %38 = arith.addf %35, %37 : vector<8x64xf32>
    %cst_25 = arith.constant 0.000000e+00 : f32
    %39 = vector.broadcast %cst_25 : f32 to vector<8x64xf32>
    %40 = arith.maximumf %38, %39 : vector<8x64xf32>
    %41 = arith.truncf %40 : vector<8x64xf32> to vector<8x64xbf16>
    %c0_26 = arith.constant 0 : index
    %c0_27 = arith.constant 0 : index
    %42 = vector.load %arg7[%c0_26, %c0_27] : memref<64x8xbf16, #tpu.memory_space<vmem>>, vector<64x8xbf16>
    %cst_28 = arith.constant dense<0.000000e+00> : vector<8x8xf32>
    %43 = tpu.matmul %41, %42, %cst_28 {dimension_numbers = #tpu.dot_dimension_numbers<[1], [0], [0], [1], [0, 0, 1, 1], [], []>} : vector<8x64xbf16>, vector<64x8xbf16>, vector<8x8xf32> -> vector<8x8xf32>
    %c5 = arith.constant 5 : index
    %c0_29 = arith.constant 0 : index
    %44 = vector.load %arg8[%c5, %c0_29] : memref<6x128xf32, #tpu.memory_space<vmem>>, vector<1x8xf32>
    %45 = vector.broadcast %44 : vector<1x8xf32> to vector<8x8xf32>
    %46 = arith.addf %43, %45 : vector<8x8xf32>
    %c0_30 = arith.constant 0 : index
    %c0_31 = arith.constant 0 : index
    %47 = vector.load %arg9[%c0_30, %c0_31] : memref<8x8xf32, #tpu.memory_space<vmem>>, vector<8x8xf32>
    tpu.vector_store %arg9[%c0_30, %c0_31], %46 {strides = array<i32>} : memref<8x8xf32, #tpu.memory_space<vmem>>, vector<8x8xf32>,
    return
  }
  func.func @transform_0(%arg0: i32) -> (i32, i32) {
    %c0_i32 = arith.constant 0 : i32
    %c0_i32_0 = arith.constant 0 : i32
    return %arg0, %c0_i32 : i32, i32
  }
  func.func @transform_1(%arg0: i32) -> (i32, i32) {
    %c0_i32 = arith.constant 0 : i32
    %c0_i32_0 = arith.constant 0 : i32
    %c0_i32_1 = arith.constant 0 : i32
    return %c0_i32, %c0_i32_0 : i32, i32
  }
  func.func @transform_2(%arg0: i32) -> (i32, i32) {
    %c0_i32 = arith.constant 0 : i32
    %c0_i32_0 = arith.constant 0 : i32
    %c0_i32_1 = arith.constant 0 : i32
    return %c0_i32, %c0_i32_0 : i32, i32
  }
  func.func @transform_3(%arg0: i32) -> (i32, i32) {
    %c0_i32 = arith.constant 0 : i32
    %c0_i32_0 = arith.constant 0 : i32
    %c0_i32_1 = arith.constant 0 : i32
    return %c0_i32, %c0_i32_0 : i32, i32
  }
  func.func @transform_4(%arg0: i32) -> (i32, i32) {
    %c0_i32 = arith.constant 0 : i32
    %c0_i32_0 = arith.constant 0 : i32
    %c0_i32_1 = arith.constant 0 : i32
    return %c0_i32, %c0_i32_0 : i32, i32
  }
  func.func @transform_5(%arg0: i32) -> (i32, i32) {
    %c0_i32 = arith.constant 0 : i32
    %c0_i32_0 = arith.constant 0 : i32
    %c0_i32_1 = arith.constant 0 : i32
    return %c0_i32, %c0_i32_0 : i32, i32
  }
  func.func @transform_6(%arg0: i32) -> (i32, i32) {
    %c0_i32 = arith.constant 0 : i32
    %c0_i32_0 = arith.constant 0 : i32
    %c0_i32_1 = arith.constant 0 : i32
    return %c0_i32, %c0_i32_0 : i32, i32
  }
  func.func @transform_7(%arg0: i32) -> (i32, i32) {
    %c0_i32 = arith.constant 0 : i32
    %c0_i32_0 = arith.constant 0 : i32
    %c0_i32_1 = arith.constant 0 : i32
    return %c0_i32, %c0_i32_0 : i32, i32
  }
  func.func @transform_8(%arg0: i32) -> (i32, i32) {
    %c0_i32 = arith.constant 0 : i32
    %c0_i32_0 = arith.constant 0 : i32
    return %arg0, %c0_i32 : i32, i32
  }
}

</mosaic_0001>

<llo_original>
// kernel: tpu_custom_call.1
$region0: #{tpu_custom_call.1}
  #allocation0 [shape = 'u32[]', space=smem, size = 0x4, offset = 0x4, fixed_abs, tag = 'smem constant byte address 0x4 - core index']
  #allocation1 [shape = 'u32[144,128]{1,0:T(1,128)}', space=vmem, size = 0x12000, scoped, tag = 'internal scratch']
  %s0 = inlined_call_operand.vmem [shape: f32[8,32], index: 0, kind: input, shape index: {}]
  %s1 = inlined_call_operand.hbm [shape: bf16[32,128], index: 1, kind: input, shape index: {}]
  %s2 = inlined_call_operand.vmem [shape: bf16[128,128], index: 2, kind: input, shape index: {}]
  %s3 = inlined_call_operand.vmem [shape: bf16[128,64], index: 3, kind: input, shape index: {}]
  %s4 = inlined_call_operand.vmem [shape: bf16[64,64], index: 4, kind: input, shape index: {}]
  %s5 = inlined_call_operand.hbm [shape: bf16[64,64], index: 5, kind: input, shape index: {}]
  %s6 = inlined_call_operand.vmem [shape: bf16[64,8], index: 6, kind: input, shape index: {}]
  %s7 = inlined_call_operand.vmem [shape: f32[6,128], index: 7, kind: input, shape index: {}]
  %s8 = inlined_call_operand.hbm [shape: f32[8,8], index: 8, kind: output, shape index: {}]
  %s9 = sld [smem:[#allocation0]]
  $region50: #{tpu_custom_call.1} parent=0
    _
  %s11 = ssub.s32 1, %s9
  %s12 = scalar_select 0, %s11, %s9
  $region1: #{tpu_custom_call.1} parent=0
    #allocation2 [shape = 'u8[8192]{0}', space=vmem, size = 0x2000, scoped, tag = 'input window, operand 1, single buffered']
    #allocation3 [shape = 's32[1]{0}', space=sflag, size = 0x4, scoped, tag = 'scoped memory for tpu_custom_call.1']
    #allocation4 [shape = 's32[1]{0}', space=sflag, size = 0x4, scoped, tag = 'scoped memory for tpu_custom_call.1']
    #allocation5 [shape = 'u8[16384]{0}', space=vmem, size = 0x4000, scoped, tag = 'input window, operand 5, single buffered']
    #allocation6 [shape = 's32[1]{0}', space=sflag, size = 0x4, scoped, tag = 'scoped memory for tpu_custom_call.1']
    #allocation7 [shape = 'u8[4096]{0}', space=vmem, size = 0x1000, scoped, tag = 'output window, operand 0, single buffered']
    %13 = vsyncpa [#allocation3], 0
    %14 = vsyncpa [#allocation6], 0
    %15 = vsyncpa [#allocation4], 0
    // Predicated region
    $region2: #{tpu_custom_call.1} parent=1 // pred_check
      _
    $region3: #{tpu_custom_call.1} parent=1 // pred_check_branch
      %17 = sbr.rel (0) target = $region5
    $region4: #{tpu_custom_call.1} parent=1 // pred_region
      _
    $region5: #{tpu_custom_call.1} parent=1 // pred_fallthru
      _
    // Predicated region
    $region6: #{tpu_custom_call.1} parent=1 // pred_check
      _
    $region7: #{tpu_custom_call.1} parent=1 // pred_check_branch
      %19 = sbr.rel (0) target = $region9
    $region8: #{tpu_custom_call.1} parent=1 // pred_region
      %s21 = ssub.s32 256, 256
      %22 = vsyncadd [#allocation3], %s21
      %s23 = sshll.u32 [#allocation2], 4
      %s24 = int_to_ptr.vmem [resolvable:$true] %s23
      %29 = dma.hbm_to_vmem [thread:$0]  %s1, 256, %s24, [#allocation3], 64, 64, 4
    $region9: #{tpu_custom_call.1} parent=1 // pred_fallthru
      _
    // Predicated region
    $region10: #{tpu_custom_call.1} parent=1 // pred_check
      _
    $region11: #{tpu_custom_call.1} parent=1 // pred_check_branch
      %31 = sbr.rel (0) target = $region13
    $region12: #{tpu_custom_call.1} parent=1 // pred_region
      _
    $region13: #{tpu_custom_call.1} parent=1 // pred_fallthru
      _
    // Predicated region
    $region14: #{tpu_custom_call.1} parent=1 // pred_check
      _
    $region15: #{tpu_custom_call.1} parent=1 // pred_check_branch
      %33 = sbr.rel (0) target = $region17
    $region16: #{tpu_custom_call.1} parent=1 // pred_region
      _
    $region17: #{tpu_custom_call.1} parent=1 // pred_fallthru
      _
    // Predicated region
    $region18: #{tpu_custom_call.1} parent=1 // pred_check
      _
    $region19: #{tpu_custom_call.1} parent=1 // pred_check_branch
      %35 = sbr.rel (0) target = $region21
    $region20: #{tpu_custom_call.1} parent=1 // pred_region
      _
    $region21: #{tpu_custom_call.1} parent=1 // pred_fallthru
      _
    // Predicated region
    $region22: #{tpu_custom_call.1} parent=1 // pred_check
      _
    $region23: #{tpu_custom_call.1} parent=1 // pred_check_branch
      %37 = sbr.rel (0) target = $region25
    $region24: #{tpu_custom_call.1} parent=1 // pred_region
      %s39 = ssub.s32 512, 512
      %40 = vsyncadd [#allocation6], %s39
      %s41 = sshll.u32 [#allocation5], 4
      %s42 = int_to_ptr.vmem [resolvable:$true] %s41
      %47 = dma.hbm_to_vmem [thread:$0]  %s5, 512, %s42, [#allocation6], 64, 64, 4
    $region25: #{tpu_custom_call.1} parent=1 // pred_fallthru
      _
    // Predicated region
    $region26: #{tpu_custom_call.1} parent=1 // pred_check
      _
    $region27: #{tpu_custom_call.1} parent=1 // pred_check_branch
      %49 = sbr.rel (0) target = $region29
    $region28: #{tpu_custom_call.1} parent=1 // pred_region
      _
    $region29: #{tpu_custom_call.1} parent=1 // pred_fallthru
      _
    // Predicated region
    $region30: #{tpu_custom_call.1} parent=1 // pred_check
      _
    $region31: #{tpu_custom_call.1} parent=1 // pred_check_branch
      %51 = sbr.rel (0) target = $region33
    $region32: #{tpu_custom_call.1} parent=1 // pred_region
      _
    $region33: #{tpu_custom_call.1} parent=1 // pred_fallthru
      _
    // Predicated region
    $region34: #{tpu_custom_call.1} parent=1 // pred_check
      _
    $region35: #{tpu_custom_call.1} parent=1 // pred_check_branch
      %53 = sbr.rel (0) target = $region37
    $region36: #{tpu_custom_call.1} parent=1 // pred_region
      %54 = dma.done [#allocation3], 256
    $region37: #{tpu_custom_call.1} parent=1 // pred_fallthru
      _
    // Predicated region
    $region38: #{tpu_custom_call.1} parent=1 // pred_check
      _
    $region39: #{tpu_custom_call.1} parent=1 // pred_check_branch
      %56 = sbr.rel (0) target = $region41
    $region40: #{tpu_custom_call.1} parent=1 // pred_region
      %57 = dma.done [#allocation6], 512
    $region41: #{tpu_custom_call.1} parent=1 // pred_fallthru
      _
    %v59 = vld [vmem:[%s0] sm:$0xff]
    %v60 = vpack.c.bf16 %v59, %v59
    %v61 = vld [vmem:[#allocation2] sm:$0xf]
    %v62 = vld [vmem:[#allocation2 + $0x4] sm:$0xf]
    %v63 = vld [vmem:[#allocation2 + $0x8] sm:$0xf]
    %v64 = vld [vmem:[#allocation2 + $0xc] sm:$0xf]
    %v65 = vld [vmem:[%s7] sm:$0x1]
    %v66 = vlaneseq
    %v67 = vshrl.u32 %v66, 7
    %v68 = vsub.s32 0, %v67
    %v69 = vrot.slane %v65, %v68
    %v74 = vunpack.c.l.b16 %v61
    %v75 = vunpack.c.l.b16 %v62
    %v76 = vunpack.c.l.b16 %v63
    %v77 = vunpack.c.l.b16 %v64
    %v78 = vpack.c.b16 %v75, %v74
    %v79 = vpack.c.b16 %v77, %v76
    %vm82 = vcmask 261120
    %v84 = vsel %vm82, %v60, 0
    %86 = vmatprep.subr.bf16.mxu0 0
    %87 = vmatpush1.bf16.msra.mxu0 0
    %88 = vmatprep.subr.bf16.mxu0 0
    %89 = vmatpush1.bf16.msra.mxu0 0
    %90 = vmatprep.subr.bf16.mxu0 0
    %91 = vmatpush1.bf16.msra.mxu0 0
    %92 = vmatprep.subr.bf16.mxu0 0
    %93 = vmatpush1.bf16.msra.mxu0 0
    %94 = vmatprep.subr.bf16.mxu0 0
    %95 = vmatpush1.bf16.msra.mxu0 0
    %96 = vmatprep.subr.bf16.mxu0 0
    %97 = vmatpush1.bf16.msra.mxu0 0
    %98 = vmatprep.subr.bf16.mxu0 0
    %99 = vmatpush1.bf16.msra.mxu0 %v79
    %100 = vmatprep.subr.bf16.mxu0 0
    %101 = vmatpush1.bf16.msra.mxu0 %v78
    %102 = vmatprep.subr.bf16.mxu0 0
    %103 = vmatpush2.bf16.msra.mxu0 0
    %104 = vmatprep.subr.bf16.mxu0 0
    %105 = vmatpush2.bf16.msra.mxu0 0
    %106 = vmatprep.subr.bf16.mxu0 0
    %107 = vmatpush2.bf16.msra.mxu0 0
    %108 = vmatprep.subr.bf16.mxu0 0
    %109 = vmatpush2.bf16.msra.mxu0 0
    %110 = vmatprep.subr.bf16.mxu0 0
    %111 = vmatpush2.bf16.msra.mxu0 0
    %112 = vmatprep.subr.bf16.mxu0 0
    %113 = vmatpush2.bf16.msra.mxu0 0
    %114 = vmatprep.subr.bf16.mxu0 0
    %115 = vmatpush2.bf16.msra.mxu0 0
    %116 = vmatprep.subr.bf16.mxu0 0
    %117 = vmatpush2.bf16.msra.mxu0 0
    %118 = vmatprep.mubr.bf16.mxu0 0
    %119 = vmatmul.mubr.bf16.gmra.mxu0 %v84
    %v120 = vpop.f32.mrf.mxu0
    %v121 = vadd.f32 %v69, %v120
    %v122 = vpop.f32.mrf.mxu0
    %v123 = vpop.f32.mrf.mxu0
    %v124 = vpop.f32.mrf.mxu0
    %125 = vdwg.mxu0
    %v126 = vmax.f32 %v121, 0.0
    %v127 = vpack.c.bf16 %v126, %v126
    %v128 = vld [vmem:[%s2] sm:$0xf]
    %v129 = vld [vmem:[%s2 + $0x4] sm:$0xf]
    %v130 = vld [vmem:[%s2 + $0x8] sm:$0xf]
    %v131 = vld [vmem:[%s2 + $0xc] sm:$0xf]
    %v132 = vld [vmem:[%s2 + $0x10] sm:$0xf]
    %v133 = vld [vmem:[%s2 + $0x14] sm:$0xf]
    %v134 = vld [vmem:[%s2 + $0x18] sm:$0xf]
    %v135 = vld [vmem:[%s2 + $0x1c] sm:$0xf]
    %v136 = vld [vmem:[%s2 + $0x20] sm:$0xf]
    %v137 = vld [vmem:[%s2 + $0x24] sm:$0xf]
    %v138 = vld [vmem:[%s2 + $0x28] sm:$0xf]
    %v139 = vld [vmem:[%s2 + $0x2c] sm:$0xf]
    %v140 = vld [vmem:[%s2 + $0x30] sm:$0xf]
    %v141 = vld [vmem:[%s2 + $0x34] sm:$0xf]
    %v142 = vld [vmem:[%s2 + $0x38] sm:$0xf]
    %v143 = vld [vmem:[%s2 + $0x3c] sm:$0xf]
    %v144 = vld [vmem:[%s7 + $0x1] sm:$0x1]
    %v145 = vlaneseq
    %v146 = vshrl.u32 %v145, 7
    %v147 = vsub.s32 0, %v146
    %v148 = vrot.slane %v144, %v147
    %v165 = vunpack.c.l.b16 %v128
    %v166 = vunpack.c.l.b16 %v129
    %v167 = vunpack.c.l.b16 %v130
    %v168 = vunpack.c.l.b16 %v131
    %v169 = vunpack.c.l.b16 %v132
    %v170 = vunpack.c.l.b16 %v133
    %v171 = vunpack.c.l.b16 %v134
    %v172 = vunpack.c.l.b16 %v135
    %v173 = vunpack.c.l.b16 %v136
    %v174 = vunpack.c.l.b16 %v137
    %v175 = vunpack.c.l.b16 %v138
    %v176 = vunpack.c.l.b16 %v139
    %v177 = vunpack.c.l.b16 %v140
    %v178 = vunpack.c.l.b16 %v141
    %v179 = vunpack.c.l.b16 %v142
    %v180 = vunpack.c.l.b16 %v143
    %v181 = vpack.c.b16 %v166, %v165
    %v182 = vpack.c.b16 %v168, %v167
    %v183 = vpack.c.b16 %v170, %v169
    %v184 = vpack.c.b16 %v172, %v171
    %v185 = vpack.c.b16 %v174, %v173
    %v186 = vpack.c.b16 %v176, %v175
    %v187 = vpack.c.b16 %v178, %v177
    %v188 = vpack.c.b16 %v180, %v179
    %197 = vmatprep.subr.bf16.mxu0 0
    %198 = vmatpush1.bf16.msra.mxu0 %v188
    %199 = vmatprep.subr.bf16.mxu0 0
    %200 = vmatpush1.bf16.msra.mxu0 %v187
    %201 = vmatprep.subr.bf16.mxu0 0
    %202 = vmatpush1.bf16.msra.mxu0 %v186
    %203 = vmatprep.subr.bf16.mxu0 0
    %204 = vmatpush1.bf16.msra.mxu0 %v185
    %205 = vmatprep.subr.bf16.mxu0 0
    %206 = vmatpush1.bf16.msra.mxu0 %v184
    %207 = vmatprep.subr.bf16.mxu0 0
    %208 = vmatpush1.bf16.msra.mxu0 %v183
    %209 = vmatprep.subr.bf16.mxu0 0
    %210 = vmatpush1.bf16.msra.mxu0 %v182
    %211 = vmatprep.subr.bf16.mxu0 0
    %212 = vmatpush1.bf16.msra.mxu0 %v181
    %213 = vmatprep.subr.bf16.mxu0 0
    %214 = vmatpush2.bf16.msra.mxu0 0
    %215 = vmatprep.subr.bf16.mxu0 0
    %216 = vmatpush2.bf16.msra.mxu0 0
    %217 = vmatprep.subr.bf16.mxu0 0
    %218 = vmatpush2.bf16.msra.mxu0 0
    %219 = vmatprep.subr.bf16.mxu0 0
    %220 = vmatpush2.bf16.msra.mxu0 0
    %221 = vmatprep.subr.bf16.mxu0 0
    %222 = vmatpush2.bf16.msra.mxu0 0
    %223 = vmatprep.subr.bf16.mxu0 0
    %224 = vmatpush2.bf16.msra.mxu0 0
    %225 = vmatprep.subr.bf16.mxu0 0
    %226 = vmatpush2.bf16.msra.mxu0 0
    %227 = vmatprep.subr.bf16.mxu0 0
    %228 = vmatpush2.bf16.msra.mxu0 0
    %229 = vmatprep.mubr.bf16.mxu0 0
    %230 = vmatmul.mubr.bf16.gmra.mxu0 %v127
    %v231 = vpop.f32.mrf.mxu0
    %v232 = vadd.f32 %v148, %v231
    %v233 = vpop.f32.mrf.mxu0
    %v234 = vpop.f32.mrf.mxu0
    %v235 = vpop.f32.mrf.mxu0
    %236 = vdwg.mxu0
    %v237 = vmax.f32 %v232, 0.0
    %v238 = vpack.c.bf16 %v237, %v237
    %v239 = vld [vmem:[%s3] sm:$0xf]
    %v240 = vld [vmem:[%s3 + $0x4] sm:$0xf]
    %v241 = vld [vmem:[%s3 + $0x8] sm:$0xf]
    %v242 = vld [vmem:[%s3 + $0xc] sm:$0xf]
    %v243 = vld [vmem:[%s3 + $0x10] sm:$0xf]
    %v244 = vld [vmem:[%s3 + $0x14] sm:$0xf]
    %v245 = vld [vmem:[%s3 + $0x18] sm:$0xf]
    %v246 = vld [vmem:[%s3 + $0x1c] sm:$0xf]
    %v247 = vld [vmem:[%s3 + $0x20] sm:$0xf]
    %v248 = vld [vmem:[%s3 + $0x24] sm:$0xf]
    %v249 = vld [vmem:[%s3 + $0x28] sm:$0xf]
    %v250 = vld [vmem:[%s3 + $0x2c] sm:$0xf]
    %v251 = vld [vmem:[%s3 + $0x30] sm:$0xf]
    %v252 = vld [vmem:[%s3 + $0x34] sm:$0xf]
    %v253 = vld [vmem:[%s3 + $0x38] sm:$0xf]
    %v254 = vld [vmem:[%s3 + $0x3c] sm:$0xf]
    %v255 = vld [vmem:[%s7 + $0x2] sm:$0x1]
    %v256 = vlaneseq
    %v257 = vshrl.u32 %v256, 7
    %v258 = vsub.s32 0, %v257
    %v259 = vrot.slane %v255, %v258
    %v276 = vunpack.c.l.b16 %v239
    %v277 = vunpack.c.l.b16 %v240
    %v278 = vunpack.c.l.b16 %v241
    %v279 = vunpack.c.l.b16 %v242
    %v280 = vunpack.c.l.b16 %v243
    %v281 = vunpack.c.l.b16 %v244
    %v282 = vunpack.c.l.b16 %v245
    %v283 = vunpack.c.l.b16 %v246
    %v284 = vunpack.c.l.b16 %v247
    %v285 = vunpack.c.l.b16 %v248
    %v286 = vunpack.c.l.b16 %v249
    %v287 = vunpack.c.l.b16 %v250
    %v288 = vunpack.c.l.b16 %v251
    %v289 = vunpack.c.l.b16 %v252
    %v290 = vunpack.c.l.b16 %v253
    %v291 = vunpack.c.l.b16 %v254
    %v292 = vpack.c.b16 %v277, %v276
    %v293 = vpack.c.b16 %v279, %v278
    %v294 = vpack.c.b16 %v281, %v280
    %v295 = vpack.c.b16 %v283, %v282
    %v296 = vpack.c.b16 %v285, %v284
    %v297 = vpack.c.b16 %v287, %v286
    %v298 = vpack.c.b16 %v289, %v288
    %v299 = vpack.c.b16 %v291, %v290
    %308 = vmatprep.subr.bf16.mxu0 0
    %309 = vmatpush1.bf16.msra.mxu0 %v299
    %310 = vmatprep.subr.bf16.mxu0 0
    %311 = vmatpush1.bf16.msra.mxu0 %v298
    %312 = vmatprep.subr.bf16.mxu0 0
    %313 = vmatpush1.bf16.msra.mxu0 %v297
    %314 = vmatprep.subr.bf16.mxu0 0
    %315 = vmatpush1.bf16.msra.mxu0 %v296
    %316 = vmatprep.subr.bf16.mxu0 0
    %317 = vmatpush1.bf16.msra.mxu0 %v295
    %318 = vmatprep.subr.bf16.mxu0 0
    %319 = vmatpush1.bf16.msra.mxu0 %v294
    %320 = vmatprep.subr.bf16.mxu0 0
    %321 = vmatpush1.bf16.msra.mxu0 %v293
    %322 = vmatprep.subr.bf16.mxu0 0
    %323 = vmatpush1.bf16.msra.mxu0 %v292
    %324 = vmatprep.subr.bf16.mxu0 0
    %325 = vmatpush2.bf16.msra.mxu0 0
    %326 = vmatprep.subr.bf16.mxu0 0
    %327 = vmatpush2.bf16.msra.mxu0 0
    %328 = vmatprep.subr.bf16.mxu0 0
    %329 = vmatpush2.bf16.msra.mxu0 0
    %330 = vmatprep.subr.bf16.mxu0 0
    %331 = vmatpush2.bf16.msra.mxu0 0
    %332 = vmatprep.subr.bf16.mxu0 0
    %333 = vmatpush2.bf16.msra.mxu0 0
    %334 = vmatprep.subr.bf16.mxu0 0
    %335 = vmatpush2.bf16.msra.mxu0 0
    %336 = vmatprep.subr.bf16.mxu0 0
    %337 = vmatpush2.bf16.msra.mxu0 0
    %338 = vmatprep.subr.bf16.mxu0 0
    %339 = vmatpush2.bf16.msra.mxu0 0
    %340 = vmatprep.mubr.bf16.mxu0 0
    %341 = vmatmul.mubr.bf16.gmra.mxu0 %v238
    %v342 = vpop.f32.mrf.mxu0
    %v343 = vadd.f32 %v259, %v342
    %v344 = vpop.f32.mrf.mxu0
    %v345 = vpop.f32.mrf.mxu0
    %v346 = vpop.f32.mrf.mxu0
    %347 = vdwg.mxu0
    %v348 = vmax.f32 %v343, 0.0
    %v349 = vpack.c.bf16 %v348, %v348
    %v350 = vld [vmem:[%s4] sm:$0xf]
    %v351 = vld [vmem:[%s4 + $0x4] sm:$0xf]
    %v352 = vld [vmem:[%s4 + $0x8] sm:$0xf]
    %v353 = vld [vmem:[%s4 + $0xc] sm:$0xf]
    %v354 = vld [vmem:[%s4 + $0x10] sm:$0xf]
    %v355 = vld [vmem:[%s4 + $0x14] sm:$0xf]
    %v356 = vld [vmem:[%s4 + $0x18] sm:$0xf]
    %v357 = vld [vmem:[%s4 + $0x1c] sm:$0xf]
    %v358 = vld [vmem:[%s7 + $0x3] sm:$0x1]
    %v359 = vlaneseq
    %v360 = vshrl.u32 %v359, 7
    %v361 = vsub.s32 0, %v360
    %v362 = vrot.slane %v358, %v361
    %v371 = vunpack.c.l.b16 %v350
    %v372 = vunpack.c.l.b16 %v351
    %v373 = vunpack.c.l.b16 %v352
    %v374 = vunpack.c.l.b16 %v353
    %v375 = vunpack.c.l.b16 %v354
    %v376 = vunpack.c.l.b16 %v355
    %v377 = vunpack.c.l.b16 %v356
    %v378 = vunpack.c.l.b16 %v357
    %v379 = vpack.c.b16 %v372, %v371
    %v380 = vpack.c.b16 %v374, %v373
    %v381 = vpack.c.b16 %v376, %v375
    %v382 = vpack.c.b16 %v378, %v377
    %vm387 = vcmask 523264
    %v389 = vsel %vm387, %v349, 0
    %391 = vmatprep.subr.bf16.mxu0 0
    %392 = vmatpush1.bf16.msra.mxu0 0
    %393 = vmatprep.subr.bf16.mxu0 0
    %394 = vmatpush1.bf16.msra.mxu0 0
    %395 = vmatprep.subr.bf16.mxu0 0
    %396 = vmatpush1.bf16.msra.mxu0 0
    %397 = vmatprep.subr.bf16.mxu0 0
    %398 = vmatpush1.bf16.msra.mxu0 0
    %399 = vmatprep.subr.bf16.mxu0 0
    %400 = vmatpush1.bf16.msra.mxu0 %v382
    %401 = vmatprep.subr.bf16.mxu0 0
    %402 = vmatpush1.bf16.msra.mxu0 %v381
    %403 = vmatprep.subr.bf16.mxu0 0
    %404 = vmatpush1.bf16.msra.mxu0 %v380
    %405 = vmatprep.subr.bf16.mxu0 0
    %406 = vmatpush1.bf16.msra.mxu0 %v379
    %407 = vmatprep.subr.bf16.mxu0 0
    %408 = vmatpush2.bf16.msra.mxu0 0
    %409 = vmatprep.subr.bf16.mxu0 0
    %410 = vmatpush2.bf16.msra.mxu0 0
    %411 = vmatprep.subr.bf16.mxu0 0
    %412 = vmatpush2.bf16.msra.mxu0 0
    %413 = vmatprep.subr.bf16.mxu0 0
    %414 = vmatpush2.bf16.msra.mxu0 0
    %415 = vmatprep.subr.bf16.mxu0 0
    %416 = vmatpush2.bf16.msra.mxu0 0
    %417 = vmatprep.subr.bf16.mxu0 0
    %418 = vmatpush2.bf16.msra.mxu0 0
    %419 = vmatprep.subr.bf16.mxu0 0
    %420 = vmatpush2.bf16.msra.mxu0 0
    %421 = vmatprep.subr.bf16.mxu0 0
    %422 = vmatpush2.bf16.msra.mxu0 0
    %423 = vmatprep.mubr.bf16.mxu0 0
    %424 = vmatmul.mubr.bf16.gmra.mxu0 %v389
    %v425 = vpop.f32.mrf.mxu0
    %v426 = vadd.f32 %v362, %v425
    %v427 = vpop.f32.mrf.mxu0
    %v428 = vpop.f32.mrf.mxu0
    %v429 = vpop.f32.mrf.mxu0
    %430 = vdwg.mxu0
    %v431 = vmax.f32 %v426, 0.0
    %v432 = vpack.c.bf16 %v431, %v431
    %v433 = vld [vmem:[#allocation5] sm:$0xf]
    %v434 = vld [vmem:[#allocation5 + $0x4] sm:$0xf]
    %v435 = vld [vmem:[#allocation5 + $0x8] sm:$0xf]
    %v436 = vld [vmem:[#allocation5 + $0xc] sm:$0xf]
    %v437 = vld [vmem:[#allocation5 + $0x10] sm:$0xf]
    %v438 = vld [vmem:[#allocation5 + $0x14] sm:$0xf]
    %v439 = vld [vmem:[#allocation5 + $0x18] sm:$0xf]
    %v440 = vld [vmem:[#allocation5 + $0x1c] sm:$0xf]
    %v441 = vld [vmem:[%s7 + $0x4] sm:$0x1]
    %v442 = vlaneseq
    %v443 = vshrl.u32 %v442, 7
    %v444 = vsub.s32 0, %v443
    %v445 = vrot.slane %v441, %v444
    %v454 = vunpack.c.l.b16 %v433
    %v455 = vunpack.c.l.b16 %v434
    %v456 = vunpack.c.l.b16 %v435
    %v457 = vunpack.c.l.b16 %v436
    %v458 = vunpack.c.l.b16 %v437
    %v459 = vunpack.c.l.b16 %v438
    %v460 = vunpack.c.l.b16 %v439
    %v461 = vunpack.c.l.b16 %v440
    %v462 = vpack.c.b16 %v455, %v454
    %v463 = vpack.c.b16 %v457, %v456
    %v464 = vpack.c.b16 %v459, %v458
    %v465 = vpack.c.b16 %v461, %v460
    %v471 = vsel %vm387, %v432, 0
    %473 = vmatprep.subr.bf16.mxu0 0
    %474 = vmatpush1.bf16.msra.mxu0 0
    %475 = vmatprep.subr.bf16.mxu0 0
    %476 = vmatpush1.bf16.msra.mxu0 0
    %477 = vmatprep.subr.bf16.mxu0 0
    %478 = vmatpush1.bf16.msra.mxu0 0
    %479 = vmatprep.subr.bf16.mxu0 0
    %480 = vmatpush1.bf16.msra.mxu0 0
    %481 = vmatprep.subr.bf16.mxu0 0
    %482 = vmatpush1.bf16.msra.mxu0 %v465
    %483 = vmatprep.subr.bf16.mxu0 0
    %484 = vmatpush1.bf16.msra.mxu0 %v464
    %485 = vmatprep.subr.bf16.mxu0 0
    %486 = vmatpush1.bf16.msra.mxu0 %v463
    %487 = vmatprep.subr.bf16.mxu0 0
    %488 = vmatpush1.bf16.msra.mxu0 %v462
    %489 = vmatprep.subr.bf16.mxu0 0
    %490 = vmatpush2.bf16.msra.mxu0 0
    %491 = vmatprep.subr.bf16.mxu0 0
    %492 = vmatpush2.bf16.msra.mxu0 0
    %493 = vmatprep.subr.bf16.mxu0 0
    %494 = vmatpush2.bf16.msra.mxu0 0
    %495 = vmatprep.subr.bf16.mxu0 0
    %496 = vmatpush2.bf16.msra.mxu0 0
    %497 = vmatprep.subr.bf16.mxu0 0
    %498 = vmatpush2.bf16.msra.mxu0 0
    %499 = vmatprep.subr.bf16.mxu0 0
    %500 = vmatpush2.bf16.msra.mxu0 0
    %501 = vmatprep.subr.bf16.mxu0 0
    %502 = vmatpush2.bf16.msra.mxu0 0
    %503 = vmatprep.subr.bf16.mxu0 0
    %504 = vmatpush2.bf16.msra.mxu0 0
    %505 = vmatprep.mubr.bf16.mxu0 0
    %506 = vmatmul.mubr.bf16.gmra.mxu0 %v471
    %v507 = vpop.f32.mrf.mxu0
    %v508 = vadd.f32 %v445, %v507
    %v509 = vpop.f32.mrf.mxu0
    %v510 = vpop.f32.mrf.mxu0
    %v511 = vpop.f32.mrf.mxu0
    %512 = vdwg.mxu0
    %v513 = vmax.f32 %v508, 0.0
    %v514 = vpack.c.bf16 %v513, %v513
    %v515 = vld [vmem:[%s6] sm:$0xf]
    %v516 = vld [vmem:[%s6 + $0x4] sm:$0xf]
    %v517 = vld [vmem:[%s6 + $0x8] sm:$0xf]
    %v518 = vld [vmem:[%s6 + $0xc] sm:$0xf]
    %v519 = vld [vmem:[%s6 + $0x10] sm:$0xf]
    %v520 = vld [vmem:[%s6 + $0x14] sm:$0xf]
    %v521 = vld [vmem:[%s6 + $0x18] sm:$0xf]
    %v522 = vld [vmem:[%s6 + $0x1c] sm:$0xf]
    %v523 = vld [vmem:[%s7 + $0x5] sm:$0x1]
    %v524 = vlaneseq
    %v525 = vshrl.u32 %v524, 7
    %v526 = vsub.s32 0, %v525
    %v527 = vrot.slane %v523, %v526
    %v536 = vunpack.c.l.b16 %v515
    %v537 = vunpack.c.l.b16 %v516
    %v538 = vunpack.c.l.b16 %v517
    %v539 = vunpack.c.l.b16 %v518
    %v540 = vunpack.c.l.b16 %v519
    %v541 = vunpack.c.l.b16 %v520
    %v542 = vunpack.c.l.b16 %v521
    %v543 = vunpack.c.l.b16 %v522
    %v544 = vpack.c.b16 %v537, %v536
    %v545 = vpack.c.b16 %v539, %v538
    %v546 = vpack.c.b16 %v541, %v540
    %v547 = vpack.c.b16 %v543, %v542
    %v553 = vsel %vm387, %v514, 0
    %555 = vmatprep.subr.bf16.mxu0 0
    %556 = vmatpush1.bf16.msra.mxu0 0
    %557 = vmatprep.subr.bf16.mxu0 0
    %558 = vmatpush1.bf16.msra.mxu0 0
    %559 = vmatprep.subr.bf16.mxu0 0
    %560 = vmatpush1.bf16.msra.mxu0 0
    %561 = vmatprep.subr.bf16.mxu0 0
    %562 = vmatpush1.bf16.msra.mxu0 0
    %563 = vmatprep.subr.bf16.mxu0 0
    %564 = vmatpush1.bf16.msra.mxu0 %v547
    %565 = vmatprep.subr.bf16.mxu0 0
    %566 = vmatpush1.bf16.msra.mxu0 %v546
    %567 = vmatprep.subr.bf16.mxu0 0
    %568 = vmatpush1.bf16.msra.mxu0 %v545
    %569 = vmatprep.subr.bf16.mxu0 0
    %570 = vmatpush1.bf16.msra.mxu0 %v544
    %571 = vmatprep.subr.bf16.mxu0 0
    %572 = vmatpush2.bf16.msra.mxu0 0
    %573 = vmatprep.subr.bf16.mxu0 0
    %574 = vmatpush2.bf16.msra.mxu0 0
    %575 = vmatprep.subr.bf16.mxu0 0
    %576 = vmatpush2.bf16.msra.mxu0 0
    %577 = vmatprep.subr.bf16.mxu0 0
    %578 = vmatpush2.bf16.msra.mxu0 0
    %579 = vmatprep.subr.bf16.mxu0 0
    %580 = vmatpush2.bf16.msra.mxu0 0
    %581 = vmatprep.subr.bf16.mxu0 0
    %582 = vmatpush2.bf16.msra.mxu0 0
    %583 = vmatprep.subr.bf16.mxu0 0
    %584 = vmatpush2.bf16.msra.mxu0 0
    %585 = vmatprep.subr.bf16.mxu0 0
    %586 = vmatpush2.bf16.msra.mxu0 0
    %587 = vmatprep.mubr.bf16.mxu0 0
    %588 = vmatmul.mubr.bf16.gmra.mxu0 %v553
    %v589 = vpop.f32.mrf.mxu0
    %v590 = vadd.f32 %v527, %v589
    %v591 = vpop.f32.mrf.mxu0
    %v592 = vpop.f32.mrf.mxu0
    %v593 = vpop.f32.mrf.mxu0
    %594 = vdwg.mxu0
    %vm595 = vcmask 64512
    %596 = vst.msk [vmem:[#allocation7] sm:$0xff] %vm595, %v590
    // Predicated region
    $region42: #{tpu_custom_call.1} parent=1 // pred_check
      _
    $region43: #{tpu_custom_call.1} parent=1 // pred_check_branch
      %598 = sbr.rel (0) target = $region45
    $region44: #{tpu_custom_call.1} parent=1 // pred_region
      %s600 = ssub.s32 128, 128
      %601 = vsyncadd [#allocation4], %s600
      %s603 = sshll.u32 [#allocation7], 4
      %s604 = int_to_ptr.vmem [resolvable:$true] %s603
      %606 = dma.vmem_to_hbm [thread:$0]  %s604, 128, %s8, [#allocation4]
    $region45: #{tpu_custom_call.1} parent=1 // pred_fallthru
      _
    // Predicated region
    $region46: #{tpu_custom_call.1} parent=1 // pred_check
      _
    $region47: #{tpu_custom_call.1} parent=1 // pred_check_branch
      %608 = sbr.rel (0) target = $region49
    $region48: #{tpu_custom_call.1} parent=1 // pred_region
      %609 = dma.done [#allocation4], 128
    $region49: #{tpu_custom_call.1} parent=1 // pred_fallthru
      _
    %610 = vsyncpa [#allocation3], 1
    %611 = vsyncpa [#allocation6], 1
    %612 = vsyncpa [#allocation4], 1

</llo_original>
